<compile_context>
chip_gen: v6e
topology: v6e:2x2x1
jax: 0.10.0
libtpu: 0.0.40
codegen_flags: <defaults>
</compile_context>

<pallas_src>
import functools

import jax
import jax.numpy as jnp
from jax.experimental import pallas as pl
from jax.experimental.pallas import tpu as pltpu

LANE = 128  # TPU lane width; each of q/k/v is padded to one lane group.


def _head_kernel(x_ref, wqkv_ref, o_ref, *, head_size):
    # x_ref: (B, T, C)   wqkv_ref: (C, 3*LANE)   o_ref: (B, T, H)
    B, T, C = x_ref.shape
    H = head_size

    # Fused QKV projection, batch folded into M: (B*T, C) @ (C, 3*LANE).
    x2d = x_ref[...].reshape(B * T, C)
    qkv = jnp.dot(x2d, wqkv_ref[...], preferred_element_type=jnp.float32)
    qkv = qkv.reshape(B, T, 3 * LANE)

    scale = H ** -0.5
    # Lane-group-aligned slices (offsets 0 / 128 / 256): no lane relayout.
    # Scale folded into q (B*T*LANE elems) instead of the (B,T,T) scores.
    q = qkv[:, :, 0:LANE] * scale
    k = qkv[:, :, LANE:2 * LANE]
    v = qkv[:, :, 2 * LANE:3 * LANE]

    # Attention scores: contract the (padded) head dim of q and k directly.
    # This is dot_general's transposed-RHS form (contracting dim is the last
    # dim of both operands) -- no explicit k transpose is materialized; verify
    # with pl.lower_as_mlir before scaling T.
    s = jnp.einsum('bqd,bkd->bqk', q, k,
                   preferred_element_type=jnp.float32)          # (B, T, T)

    # Causal mask from a single (T, T) compare; jnp.where broadcasts over B.
    row = jax.lax.broadcasted_iota(jnp.int32, (T, T), 0)
    col = jax.lax.broadcasted_iota(jnp.int32, (T, T), 1)
    s = jnp.where(col <= row, s, -jnp.inf)

    # Numerically stable softmax (diagonal is always unmasked, so the row sum
    # is never zero); exact EUP reciprocal for the denominator.
    s = s - jnp.max(s, axis=-1, keepdims=True)
    e = jnp.exp(s)
    p = e * pl.reciprocal(jnp.sum(e, axis=-1, keepdims=True), approx=False)

    out = jnp.einsum('bqk,bkd->bqd', p, v,
                     preferred_element_type=jnp.float32)        # (B, T, LANE)

    # Only the first H lanes are real (rest are zero-padding); the 16-wide
    # store is a masked partial store, inherent to the single-head output API.
    o_ref[...] = out[:, :, :H].astype(o_ref.dtype)


def fuse_qkv_weights(wq, wk, wv, lane=LANE):
    """Parameter-init-time fusion of PyTorch (H, C) Linear weights.

    Returns a (C, 3*lane) matrix with q/k/v each padded to its own lane group,
    so the per-forward path carries no transpose/concat HLO ops.
    """
    H, C = wq.shape
    assert H <= lane, "head_size must fit one lane group"

    def pad(w):  # (H, C) -> (C, lane), x @ W.T convention, zero-padded lanes.
        return jnp.pad(w.T, ((0, 0), (0, lane - H)))

    return jnp.concatenate([pad(wq), pad(wk), pad(wv)], axis=1)


@functools.partial(jax.jit, static_argnames=("head_size",))
def head_forward(x, wqkv, *, head_size):
    """x: (B, T, C) float32; wqkv: pre-fused (C, 3*LANE) weight."""
    B, T, C = x.shape
    H = head_size

    flops = 2 * B * T * C * (3 * LANE) + 2 * 2 * B * T * T * LANE
    transcendentals = B * T * T                                  # exp(scores)
    bytes_accessed = 4 * (B * T * C + C * 3 * LANE + B * T * H)  # f32 in/out

    return pl.pallas_call(
        functools.partial(_head_kernel, head_size=H),
        out_shape=jax.ShapeDtypeStruct((B, T, H), x.dtype),
        in_specs=[
            pl.BlockSpec(memory_space=pltpu.MemorySpace.VMEM),
            pl.BlockSpec(memory_space=pltpu.MemorySpace.VMEM),
        ],
        out_specs=pl.BlockSpec(memory_space=pltpu.MemorySpace.VMEM),
        cost_estimate=pl.CostEstimate(
            flops=flops,
            transcendentals=transcendentals,
            bytes_accessed=bytes_accessed,
        ),
    )(x, wqkv)


if __name__ == "__main__":
    # Shapes consistent with the module: block_size (T) = 64.
    B = 2     # batch
    T = 64    # block_size
    C = 32    # n_embeddings
    H = 16    # head_size

    key = jax.random.PRNGKey(0)
    kx, kq, kk, kv = jax.random.split(key, 4)

    x = jax.random.normal(kx, (B, T, C), dtype=jnp.float32)
    # PyTorch nn.Linear weight shape is (out_features, in_features) = (H, C).
    wq = jax.random.normal(kq, (H, C), dtype=jnp.float32) * (C ** -0.5)
    wk = jax.random.normal(kk, (H, C), dtype=jnp.float32) * (C ** -0.5)
    wv = jax.random.normal(kv, (H, C), dtype=jnp.float32) * (C ** -0.5)

    # Parameter-init-time step, NOT part of the per-forward path.
    wqkv = fuse_qkv_weights(wq, wk, wv)

    out = head_forward(x, wqkv, head_size=H)
    out = jax.block_until_ready(out)

    # Pure-JAX reference at HIGHEST matmul precision (eval mode: dropout = id).
    P = jax.lax.Precision.HIGHEST
    q = jnp.einsum('btc,hc->bth', x, wq, precision=P)
    k = jnp.einsum('btc,hc->bth', x, wk, precision=P)
    v = jnp.einsum('btc,hc->bth', x, wv, precision=P)
    wei = jnp.einsum('bqh,bkh->bqk', q, k, precision=P) * (H ** -0.5)
    mask = jnp.tril(jnp.ones((T, T), dtype=bool))
    wei = jnp.where(mask, wei, -jnp.inf)
    wei = jax.nn.softmax(wei, axis=-1)
    ref = jnp.einsum('bqk,bkh->bqh', wei, v, precision=P)

    # Tolerance covers only matmul precision-mode differences (the softmax
    # reciprocal is exact now, approx=False).
    assert jnp.allclose(out, ref, atol=2e-3, rtol=2e-3), "mismatch vs reference"

    print("KERNEL_OK")
</pallas_src>

<mosaic_0001>
module attributes {stable_mosaic.version = 11 : i64} {
  func.func @_head_kernel(%arg0: memref<2x64x32xf32, #tpu.memory_space<vmem>>, %arg1: memref<32x384xf32, #tpu.memory_space<vmem>>, %arg2: memref<2x64x16xf32, #tpu.memory_space<vmem>>) attributes {dimension_semantics = [], scalar_prefetch = 0 : i64, scratch_operands = 0 : i64, tpu.core_type = #tpu.core_type<tc>} {
    %c0 = arith.constant 0 : index
    %c0_0 = arith.constant 0 : index
    %c0_1 = arith.constant 0 : index
    %0 = vector.load %arg0[%c0, %c0_0, %c0_1] : memref<2x64x32xf32, #tpu.memory_space<vmem>>, vector<2x64x32xf32>
    %1 = vector.shape_cast %0 : vector<2x64x32xf32> to vector<128x32xf32>
    %c0_2 = arith.constant 0 : index
    %c0_3 = arith.constant 0 : index
    %2 = vector.load %arg1[%c0_2, %c0_3] : memref<32x384xf32, #tpu.memory_space<vmem>>, vector<32x384xf32>
    %cst = arith.constant dense<0.000000e+00> : vector<128x384xf32>
    %3 = tpu.matmul %1, %2, %cst {dimension_numbers = #tpu.dot_dimension_numbers<[1], [0], [0], [1], [0, 0, 1, 1], [], []>} : vector<128x32xf32>, vector<32x384xf32>, vector<128x384xf32> -> vector<128x384xf32>
    %4 = vector.shape_cast %3 : vector<128x384xf32> to vector<2x64x384xf32>
    %5 = vector.extract_strided_slice %4 {offsets = [0, 0, 0], sizes = [2, 64, 128], strides = [1, 1, 1]} : vector<2x64x384xf32> to vector<2x64x128xf32>
    %cst_4 = arith.constant 2.500000e-01 : f32
    %6 = vector.broadcast %cst_4 : f32 to vector<2x64x128xf32>
    %7 = arith.mulf %5, %6 : vector<2x64x128xf32>
    %8 = vector.extract_strided_slice %4 {offsets = [0, 0, 128], sizes = [2, 64, 128], strides = [1, 1, 1]} : vector<2x64x384xf32> to vector<2x64x128xf32>
    %9 = vector.extract_strided_slice %4 {offsets = [0, 0, 256], sizes = [2, 64, 128], strides = [1, 1, 1]} : vector<2x64x384xf32> to vector<2x64x128xf32>
    "tpu.trace_start"() <{level = 10 : i32, message = "bqd,bkd->bqk"}> : () -> ()
    %cst_5 = arith.constant dense<0.000000e+00> : vector<2x64x64xf32>
    %10 = tpu.matmul %7, %8, %cst_5 {dimension_numbers = #tpu.dot_dimension_numbers<[2], [2], [1], [1], [0, 0, 0, 1, 1, 1], [0], [0]>} : vector<2x64x128xf32>, vector<2x64x128xf32>, vector<2x64x64xf32> -> vector<2x64x64xf32>
    "tpu.trace_stop"() : () -> ()
    %11 = tpu.iota {dimensions = array<i32: 0>} : vector<64x64xi32>
    %12 = tpu.iota {dimensions = array<i32: 1>} : vector<64x64xi32>
    %13 = arith.cmpi sle, %12, %11 : vector<64x64xi32>
    %cst_6 = arith.constant 0xFF800000 : f32
    %14 = vector.shape_cast %13 : vector<64x64xi1> to vector<1x64x64xi1>
    %15 = vector.broadcast %14 : vector<1x64x64xi1> to vector<2x64x64xi1>
    %16 = vector.broadcast %cst_6 : f32 to vector<2x64x64xf32>
    %17 = arith.select %15, %10, %16 : vector<2x64x64xi1>, vector<2x64x64xf32>
    %cst_7 = arith.constant dense<0xFF800000> : vector<2x64xf32>
    %18 = vector.multi_reduction <maximumf>, %17, %cst_7 [2] : vector<2x64x64xf32> to vector<2x64xf32>
    %19 = vector.shape_cast %18 : vector<2x64xf32> to vector<2x64x1xf32>
    %20 = vector.broadcast %19 : vector<2x64x1xf32> to vector<2x64x64xf32>
    %21 = arith.subf %17, %20 : vector<2x64x64xf32>
    %22 = math.exp %21 : vector<2x64x64xf32>
    %cst_8 = arith.constant dense<0.000000e+00> : vector<2x64xf32>
    %23 = vector.multi_reduction <add>, %22, %cst_8 [2] : vector<2x64x64xf32> to vector<2x64xf32>
    %24 = vector.shape_cast %23 : vector<2x64xf32> to vector<2x64x1xf32>
    %25 = tpu.reciprocal %24 : vector<2x64x1xf32> -> vector<2x64x1xf32>
    %26 = vector.broadcast %25 : vector<2x64x1xf32> to vector<2x64x64xf32>
    %27 = arith.mulf %22, %26 : vector<2x64x64xf32>
    "tpu.trace_start"() <{level = 10 : i32, message = "bqk,bkd->bqd"}> : () -> ()
    %cst_9 = arith.constant dense<0.000000e+00> : vector<2x64x128xf32>
    %28 = tpu.matmul %27, %9, %cst_9 {dimension_numbers = #tpu.dot_dimension_numbers<[2], [1], [1], [2], [0, 0, 0, 1, 1, 2], [0], [0]>} : vector<2x64x64xf32>, vector<2x64x128xf32>, vector<2x64x128xf32> -> vector<2x64x128xf32>
    "tpu.trace_stop"() : () -> ()
    %29 = vector.extract_strided_slice %28 {offsets = [0, 0, 0], sizes = [2, 64, 16], strides = [1, 1, 1]} : vector<2x64x128xf32> to vector<2x64x16xf32>
    %c0_10 = arith.constant 0 : index
    %c0_11 = arith.constant 0 : index
    %c0_12 = arith.constant 0 : index
    %30 = vector.load %arg2[%c0_10, %c0_11, %c0_12] : memref<2x64x16xf32, #tpu.memory_space<vmem>>, vector<2x64x16xf32>
    tpu.vector_store %arg2[%c0_10, %c0_11, %c0_12], %29 {strides = array<i32>} : memref<2x64x16xf32, #tpu.memory_space<vmem>>, vector<2x64x16xf32>,
    return
  }
}

</mosaic_0001>

<llo_original>
// kernel: head_forward.1
$region0: #{head_forward.1}
  #allocation0 [shape = 'u32[]', space=smem, size = 0x4, offset = 0x4, fixed_abs, tag = 'smem constant byte address 0x4 - core index']
  #allocation1 [shape = 'u32[144,128]{1,0:T(1,128)}', space=vmem, size = 0x12000, scoped, tag = 'internal scratch']
  %s0 = inlined_call_operand.vmem [shape: f32[2,64,32], index: 0, kind: input, shape index: {}]
  %s1 = inlined_call_operand.vmem [shape: f32[32,384], index: 1, kind: input, shape index: {}]
  %s2 = inlined_call_operand.vmem [shape: f32[2,64,16], index: 2, kind: output, shape index: {}]
  %s3 = sld [smem:[#allocation0]]
  $region18: #{head_forward.1} parent=0
    _
  %s5 = ssub.s32 1, %s3
  %s6 = scalar_select 0, %s5, %s3
  // Predicated region
  $region2: #{head_forward.1} parent=0 // pred_check
    _
  $region3: #{head_forward.1} parent=0 // pred_check_branch
    %8 = sbr.rel (0) target = $region5
  $region4: #{head_forward.1} parent=0 // pred_region
    _
  $region5: #{head_forward.1} parent=0 // pred_fallthru
    _
  // Predicated region
  $region6: #{head_forward.1} parent=0 // pred_check
    _
  $region7: #{head_forward.1} parent=0 // pred_check_branch
    %10 = sbr.rel (0) target = $region9
  $region8: #{head_forward.1} parent=0 // pred_region
    _
  $region9: #{head_forward.1} parent=0 // pred_fallthru
    _
  %v11 = vld [vmem:[%s0] sm:$0xff]
  %v12 = vld [vmem:[%s0 + $0x8] sm:$0xff]
  %v13 = vld [vmem:[%s0 + $0x10] sm:$0xff]
  %v14 = vld [vmem:[%s0 + $0x18] sm:$0xff]
  %v15 = vld [vmem:[%s0 + $0x20] sm:$0xff]
  %v16 = vld [vmem:[%s0 + $0x28] sm:$0xff]
  %v17 = vld [vmem:[%s0 + $0x30] sm:$0xff]
  %v18 = vld [vmem:[%s0 + $0x38] sm:$0xff]
  %v19 = vld [vmem:[%s0 + $0x40] sm:$0xff]
  %v20 = vld [vmem:[%s0 + $0x48] sm:$0xff]
  %v21 = vld [vmem:[%s0 + $0x50] sm:$0xff]
  %v22 = vld [vmem:[%s0 + $0x58] sm:$0xff]
  %v23 = vld [vmem:[%s0 + $0x60] sm:$0xff]
  %v24 = vld [vmem:[%s0 + $0x68] sm:$0xff]
  %v25 = vld [vmem:[%s0 + $0x70] sm:$0xff]
  %v26 = vld [vmem:[%s0 + $0x78] sm:$0xff]
  %v27 = vld [vmem:[%s1] sm:$0xff]
  %v28 = vld [vmem:[%s1 + $0x8] sm:$0xff]
  %v29 = vld [vmem:[%s1 + $0x10] sm:$0xff]
  %v30 = vld [vmem:[%s1 + $0x18] sm:$0xff]
  %v31 = vld [vmem:[%s1 + $0x20] sm:$0xff]
  %v32 = vld [vmem:[%s1 + $0x28] sm:$0xff]
  %v33 = vld [vmem:[%s1 + $0x30] sm:$0xff]
  %v34 = vld [vmem:[%s1 + $0x38] sm:$0xff]
  %v35 = vld [vmem:[%s1 + $0x40] sm:$0xff]
  %v36 = vld [vmem:[%s1 + $0x48] sm:$0xff]
  %v37 = vld [vmem:[%s1 + $0x50] sm:$0xff]
  %v38 = vld [vmem:[%s1 + $0x58] sm:$0xff]
  %vm39 = vcmask 261120
  %v41 = vsel %vm39, %v11, 0
  %v44 = vsel %vm39, %v12, 0
  %v47 = vsel %vm39, %v13, 0
  %v50 = vsel %vm39, %v14, 0
  %v53 = vsel %vm39, %v15, 0
  %v56 = vsel %vm39, %v16, 0
  %v59 = vsel %vm39, %v17, 0
  %v62 = vsel %vm39, %v18, 0
  %v65 = vsel %vm39, %v19, 0
  %v68 = vsel %vm39, %v20, 0
  %v71 = vsel %vm39, %v21, 0
  %v74 = vsel %vm39, %v22, 0
  %v77 = vsel %vm39, %v23, 0
  %v80 = vsel %vm39, %v24, 0
  %v83 = vsel %vm39, %v25, 0
  %v86 = vsel %vm39, %v26, 0
  %88 = vmatprep.subr.mxu0 0.0
  %89 = vmatpush1.msra.mxu0 0.0
  %90 = vmatprep.subr.mxu0 0.0
  %91 = vmatpush1.msra.mxu0 0.0
  %92 = vmatprep.subr.mxu0 0.0
  %93 = vmatpush1.msra.mxu0 0.0
  %94 = vmatprep.subr.mxu0 0.0
  %95 = vmatpush1.msra.mxu0 0.0
  %96 = vmatprep.subr.mxu0 0.0
  %97 = vmatpush1.msra.mxu0 0.0
  %98 = vmatprep.subr.mxu0 0.0
  %99 = vmatpush1.msra.mxu0 0.0
  %100 = vmatprep.subr.mxu0 0.0
  %101 = vmatpush1.msra.mxu0 0.0
  %102 = vmatprep.subr.mxu0 0.0
  %103 = vmatpush1.msra.mxu0 0.0
  %104 = vmatprep.subr.mxu0 0.0
  %105 = vmatpush1.msra.mxu0 0.0
  %106 = vmatprep.subr.mxu0 0.0
  %107 = vmatpush1.msra.mxu0 0.0
  %108 = vmatprep.subr.mxu0 0.0
  %109 = vmatpush1.msra.mxu0 0.0
  %110 = vmatprep.subr.mxu0 0.0
  %111 = vmatpush1.msra.mxu0 0.0
  %112 = vmatprep.subr.mxu0 %v37
  %113 = vmatpush1.msra.mxu0 %v36
  %114 = vmatprep.subr.mxu0 %v34
  %115 = vmatpush1.msra.mxu0 %v33
  %116 = vmatprep.subr.mxu0 %v31
  %117 = vmatpush1.msra.mxu0 %v30
  %118 = vmatprep.subr.mxu0 %v28
  %119 = vmatpush1.msra.mxu0 %v27
  %120 = vmatprep.subr.mxu0 0.0
  %121 = vmatpush2.msra.mxu0 0.0
  %122 = vmatprep.subr.mxu0 0.0
  %123 = vmatpush2.msra.mxu0 0.0
  %124 = vmatprep.subr.mxu0 0.0
  %125 = vmatpush2.msra.mxu0 0.0
  %126 = vmatprep.subr.mxu0 0.0
  %127 = vmatpush2.msra.mxu0 0.0
  %128 = vmatprep.subr.mxu0 0.0
  %129 = vmatpush2.msra.mxu0 0.0
  %130 = vmatprep.subr.mxu0 0.0
  %131 = vmatpush2.msra.mxu0 0.0
  %132 = vmatprep.subr.mxu0 0.0
  %133 = vmatpush2.msra.mxu0 0.0
  %134 = vmatprep.subr.mxu0 0.0
  %135 = vmatpush2.msra.mxu0 0.0
  %136 = vmatprep.subr.mxu0 0.0
  %137 = vmatpush2.msra.mxu0 0.0
  %138 = vmatprep.subr.mxu0 0.0
  %139 = vmatpush2.msra.mxu0 0.0
  %140 = vmatprep.subr.mxu0 0.0
  %141 = vmatpush2.msra.mxu0 0.0
  %142 = vmatprep.subr.mxu0 0.0
  %143 = vmatpush2.msra.mxu0 0.0
  %144 = vmatprep.subr.mxu0 0.0
  %145 = vmatpush2.msra.mxu0 0.0
  %146 = vmatprep.subr.mxu0 0.0
  %147 = vmatpush2.msra.mxu0 0.0
  %148 = vmatprep.subr.mxu0 0.0
  %149 = vmatpush2.msra.mxu0 0.0
  %150 = vmatprep.subr.mxu0 0.0
  %151 = vmatpush2.msra.mxu0 0.0
  %152 = vmatprep.mubr.f32.mxu0 0.0
  %153 = vmatmul.mubr.f32.gmra.mxu0 %v41
  %v154 = vpop.f32.mrf.mxu0
  %v155 = vadd.f32 0.0, %v154
  %v156 = vpop.f32.mrf.mxu0
  %v157 = vadd.f32 0.0, %v156
  %158 = vmatprep.mubr.f32.mxu0 0.0
  %159 = vmatmul.mubr.f32.gmra.mxu0 %v44
  %v160 = vpop.f32.mrf.mxu0
  %v161 = vadd.f32 0.0, %v160
  %v162 = vpop.f32.mrf.mxu0
  %v163 = vadd.f32 0.0, %v162
  %164 = vmatprep.mubr.f32.mxu0 0.0
  %165 = vmatmul.mubr.f32.gmra.mxu0 %v47
  %v166 = vpop.f32.mrf.mxu0
  %v167 = vadd.f32 0.0, %v166
  %v168 = vpop.f32.mrf.mxu0
  %v169 = vadd.f32 0.0, %v168
  %170 = vmatprep.mubr.f32.mxu0 0.0
  %171 = vmatmul.mubr.f32.gmra.mxu0 %v50
  %v172 = vpop.f32.mrf.mxu0
  %v173 = vadd.f32 0.0, %v172
  %v174 = vpop.f32.mrf.mxu0
  %v175 = vadd.f32 0.0, %v174
  %176 = vmatprep.mubr.f32.mxu0 0.0
  %177 = vmatmul.mubr.f32.gmra.mxu0 %v53
  %v178 = vpop.f32.mrf.mxu0
  %v179 = vadd.f32 0.0, %v178
  %v180 = vpop.f32.mrf.mxu0
  %v181 = vadd.f32 0.0, %v180
  %182 = vmatprep.mubr.f32.mxu0 0.0
  %183 = vmatmul.mubr.f32.gmra.mxu0 %v56
  %v184 = vpop.f32.mrf.mxu0
  %v185 = vadd.f32 0.0, %v184
  %v186 = vpop.f32.mrf.mxu0
  %v187 = vadd.f32 0.0, %v186
  %188 = vmatprep.mubr.f32.mxu0 0.0
  %189 = vmatmul.mubr.f32.gmra.mxu0 %v59
  %v190 = vpop.f32.mrf.mxu0
  %v191 = vadd.f32 0.0, %v190
  %v192 = vpop.f32.mrf.mxu0
  %v193 = vadd.f32 0.0, %v192
  %194 = vmatprep.mubr.f32.mxu0 0.0
  %195 = vmatmul.mubr.f32.gmra.mxu0 %v62
  %v196 = vpop.f32.mrf.mxu0
  %v197 = vadd.f32 0.0, %v196
  %v198 = vpop.f32.mrf.mxu0
  %v199 = vadd.f32 0.0, %v198
  %200 = vmatprep.mubr.f32.mxu0 0.0
  %201 = vmatmul.mubr.f32.gmra.mxu0 %v65
  %v202 = vpop.f32.mrf.mxu0
  %v203 = vadd.f32 0.0, %v202
  %v204 = vpop.f32.mrf.mxu0
  %v205 = vadd.f32 0.0, %v204
  %206 = vmatprep.mubr.f32.mxu0 0.0
  %207 = vmatmul.mubr.f32.gmra.mxu0 %v68
  %v208 = vpop.f32.mrf.mxu0
  %v209 = vadd.f32 0.0, %v208
  %v210 = vpop.f32.mrf.mxu0
  %v211 = vadd.f32 0.0, %v210
  %212 = vmatprep.mubr.f32.mxu0 0.0
  %213 = vmatmul.mubr.f32.gmra.mxu0 %v71
  %v214 = vpop.f32.mrf.mxu0
  %v215 = vadd.f32 0.0, %v214
  %v216 = vpop.f32.mrf.mxu0
  %v217 = vadd.f32 0.0, %v216
  %218 = vmatprep.mubr.f32.mxu0 0.0
  %219 = vmatmul.mubr.f32.gmra.mxu0 %v74
  %v220 = vpop.f32.mrf.mxu0
  %v221 = vadd.f32 0.0, %v220
  %v222 = vpop.f32.mrf.mxu0
  %v223 = vadd.f32 0.0, %v222
  %224 = vmatprep.mubr.f32.mxu0 0.0
  %225 = vmatmul.mubr.f32.gmra.mxu0 %v77
  %v226 = vpop.f32.mrf.mxu0
  %v227 = vadd.f32 0.0, %v226
  %v228 = vpop.f32.mrf.mxu0
  %v229 = vadd.f32 0.0, %v228
  %230 = vmatprep.mubr.f32.mxu0 0.0
  %231 = vmatmul.mubr.f32.gmra.mxu0 %v80
  %v232 = vpop.f32.mrf.mxu0
  %v233 = vadd.f32 0.0, %v232
  %v234 = vpop.f32.mrf.mxu0
  %v235 = vadd.f32 0.0, %v234
  %236 = vmatprep.mubr.f32.mxu0 0.0
  %237 = vmatmul.mubr.f32.gmra.mxu0 %v83
  %v238 = vpop.f32.mrf.mxu0
  %v239 = vadd.f32 0.0, %v238
  %v240 = vpop.f32.mrf.mxu0
  %v241 = vadd.f32 0.0, %v240
  %242 = vmatprep.mubr.f32.mxu0 0.0
  %243 = vmatmul.mubr.f32.gmra.mxu0 %v86
  %v244 = vpop.f32.mrf.mxu0
  %v245 = vadd.f32 0.0, %v244
  %v246 = vpop.f32.mrf.mxu0
  %v247 = vadd.f32 0.0, %v246
  %248 = vdwg.mxu0
  %249 = vmatprep.subr.mxu0 0.0
  %250 = vmatpush1.msra.mxu0 0.0
  %251 = vmatprep.subr.mxu0 0.0
  %252 = vmatpush1.msra.mxu0 0.0
  %253 = vmatprep.subr.mxu0 0.0
  %254 = vmatpush1.msra.mxu0 0.0
  %255 = vmatprep.subr.mxu0 0.0
  %256 = vmatpush1.msra.mxu0 0.0
  %257 = vmatprep.subr.mxu0 0.0
  %258 = vmatpush1.msra.mxu0 0.0
  %259 = vmatprep.subr.mxu0 0.0
  %260 = vmatpush1.msra.mxu0 0.0
  %261 = vmatprep.subr.mxu0 0.0
  %262 = vmatpush1.msra.mxu0 0.0
  %263 = vmatprep.subr.mxu0 0.0
  %264 = vmatpush1.msra.mxu0 0.0
  %265 = vmatprep.subr.mxu0 0.0
  %266 = vmatpush1.msra.mxu0 0.0
  %267 = vmatprep.subr.mxu0 0.0
  %268 = vmatpush1.msra.mxu0 0.0
  %269 = vmatprep.subr.mxu0 0.0
  %270 = vmatpush1.msra.mxu0 0.0
  %271 = vmatprep.subr.mxu0 0.0
  %272 = vmatpush1.msra.mxu0 0.0
  %273 = vmatprep.subr.mxu0 0.0
  %274 = vmatpush1.msra.mxu0 %v38
  %275 = vmatprep.subr.mxu0 0.0
  %276 = vmatpush1.msra.mxu0 %v35
  %277 = vmatprep.subr.mxu0 0.0
  %278 = vmatpush1.msra.mxu0 %v32
  %279 = vmatprep.subr.mxu0 0.0
  %280 = vmatpush1.msra.mxu0 %v29
  %281 = vmatprep.subr.mxu0 0.0
  %282 = vmatpush2.msra.mxu0 0.0
  %283 = vmatprep.subr.mxu0 0.0
  %284 = vmatpush2.msra.mxu0 0.0
  %285 = vmatprep.subr.mxu0 0.0
  %286 = vmatpush2.msra.mxu0 0.0
  %287 = vmatprep.subr.mxu0 0.0
  %288 = vmatpush2.msra.mxu0 0.0
  %289 = vmatprep.subr.mxu0 0.0
  %290 = vmatpush2.msra.mxu0 0.0
  %291 = vmatprep.subr.mxu0 0.0
  %292 = vmatpush2.msra.mxu0 0.0
  %293 = vmatprep.subr.mxu0 0.0
  %294 = vmatpush2.msra.mxu0 0.0
  %295 = vmatprep.subr.mxu0 0.0
  %296 = vmatpush2.msra.mxu0 0.0
  %297 = vmatprep.subr.mxu0 0.0
  %298 = vmatpush2.msra.mxu0 0.0
  %299 = vmatprep.subr.mxu0 0.0
  %300 = vmatpush2.msra.mxu0 0.0
  %301 = vmatprep.subr.mxu0 0.0
  %302 = vmatpush2.msra.mxu0 0.0
  %303 = vmatprep.subr.mxu0 0.0
  %304 = vmatpush2.msra.mxu0 0.0
  %305 = vmatprep.subr.mxu0 0.0
  %306 = vmatpush2.msra.mxu0 0.0
  %307 = vmatprep.subr.mxu0 0.0
  %308 = vmatpush2.msra.mxu0 0.0
  %309 = vmatprep.subr.mxu0 0.0
  %310 = vmatpush2.msra.mxu0 0.0
  %311 = vmatprep.subr.mxu0 0.0
  %312 = vmatpush2.msra.mxu0 0.0
  %313 = vmatprep.mubr.f32.mxu0 0.0
  %314 = vmatmul.mubr.f32.gmra.mxu0 %v41
  %v315 = vpop.f32.mrf.mxu0
  %v316 = vadd.f32 0.0, %v315
  %v317 = vpop.f32.mrf.mxu0
  %318 = vmatprep.mubr.f32.mxu0 0.0
  %319 = vmatmul.mubr.f32.gmra.mxu0 %v44
  %v320 = vpop.f32.mrf.mxu0
  %v321 = vadd.f32 0.0, %v320
  %v322 = vpop.f32.mrf.mxu0
  %323 = vmatprep.mubr.f32.mxu0 0.0
  %324 = vmatmul.mubr.f32.gmra.mxu0 %v47
  %v325 = vpop.f32.mrf.mxu0
  %v326 = vadd.f32 0.0, %v325
  %v327 = vpop.f32.mrf.mxu0
  %328 = vmatprep.mubr.f32.mxu0 0.0
  %329 = vmatmul.mubr.f32.gmra.mxu0 %v50
  %v330 = vpop.f32.mrf.mxu0
  %v331 = vadd.f32 0.0, %v330
  %v332 = vpop.f32.mrf.mxu0
  %333 = vmatprep.mubr.f32.mxu0 0.0
  %334 = vmatmul.mubr.f32.gmra.mxu0 %v53
  %v335 = vpop.f32.mrf.mxu0
  %v336 = vadd.f32 0.0, %v335
  %v337 = vpop.f32.mrf.mxu0
  %338 = vmatprep.mubr.f32.mxu0 0.0
  %339 = vmatmul.mubr.f32.gmra.mxu0 %v56
  %v340 = vpop.f32.mrf.mxu0
  %v341 = vadd.f32 0.0, %v340
  %v342 = vpop.f32.mrf.mxu0
  %343 = vmatprep.mubr.f32.mxu0 0.0
  %344 = vmatmul.mubr.f32.gmra.mxu0 %v59
  %v345 = vpop.f32.mrf.mxu0
  %v346 = vadd.f32 0.0, %v345
  %v347 = vpop.f32.mrf.mxu0
  %348 = vmatprep.mubr.f32.mxu0 0.0
  %349 = vmatmul.mubr.f32.gmra.mxu0 %v62
  %v350 = vpop.f32.mrf.mxu0
  %v351 = vadd.f32 0.0, %v350
  %v352 = vpop.f32.mrf.mxu0
  %353 = vmatprep.mubr.f32.mxu0 0.0
  %354 = vmatmul.mubr.f32.gmra.mxu0 %v65
  %v355 = vpop.f32.mrf.mxu0
  %v356 = vadd.f32 0.0, %v355
  %v357 = vpop.f32.mrf.mxu0
  %358 = vmatprep.mubr.f32.mxu0 0.0
  %359 = vmatmul.mubr.f32.gmra.mxu0 %v68
  %v360 = vpop.f32.mrf.mxu0
  %v361 = vadd.f32 0.0, %v360
  %v362 = vpop.f32.mrf.mxu0
  %363 = vmatprep.mubr.f32.mxu0 0.0
  %364 = vmatmul.mubr.f32.gmra.mxu0 %v71
  %v365 = vpop.f32.mrf.mxu0
  %v366 = vadd.f32 0.0, %v365
  %v367 = vpop.f32.mrf.mxu0
  %368 = vmatprep.mubr.f32.mxu0 0.0
  %369 = vmatmul.mubr.f32.gmra.mxu0 %v74
  %v370 = vpop.f32.mrf.mxu0
  %v371 = vadd.f32 0.0, %v370
  %v372 = vpop.f32.mrf.mxu0
  %373 = vmatprep.mubr.f32.mxu0 0.0
  %374 = vmatmul.mubr.f32.gmra.mxu0 %v77
  %v375 = vpop.f32.mrf.mxu0
  %v376 = vadd.f32 0.0, %v375
  %v377 = vpop.f32.mrf.mxu0
  %378 = vmatprep.mubr.f32.mxu0 0.0
  %379 = vmatmul.mubr.f32.gmra.mxu0 %v80
  %v380 = vpop.f32.mrf.mxu0
  %v381 = vadd.f32 0.0, %v380
  %v382 = vpop.f32.mrf.mxu0
  %383 = vmatprep.mubr.f32.mxu0 0.0
  %384 = vmatmul.mubr.f32.gmra.mxu0 %v83
  %v385 = vpop.f32.mrf.mxu0
  %v386 = vadd.f32 0.0, %v385
  %v387 = vpop.f32.mrf.mxu0
  %388 = vmatprep.mubr.f32.mxu0 0.0
  %389 = vmatmul.mubr.f32.gmra.mxu0 %v86
  %v390 = vpop.f32.mrf.mxu0
  %v391 = vadd.f32 0.0, %v390
  %v392 = vpop.f32.mrf.mxu0
  %393 = vdwg.mxu0
  %v394 = vmul.f32 %v155, 0.25
  %v395 = vmul.f32 %v161, 0.25
  %v396 = vmul.f32 %v167, 0.25
  %v397 = vmul.f32 %v173, 0.25
  %v398 = vmul.f32 %v179, 0.25
  %v399 = vmul.f32 %v185, 0.25
  %v400 = vmul.f32 %v191, 0.25
  %v401 = vmul.f32 %v197, 0.25
  %v402 = vmul.f32 %v203, 0.25
  %v403 = vmul.f32 %v209, 0.25
  %v404 = vmul.f32 %v215, 0.25
  %v405 = vmul.f32 %v221, 0.25
  %v406 = vmul.f32 %v227, 0.25
  %v407 = vmul.f32 %v233, 0.25
  %v408 = vmul.f32 %v239, 0.25
  %v409 = vmul.f32 %v245, 0.25
  %410 = vmatprep.subr.mxu0 0.0
  %411 = vmatpush1.xpose.msra.mxu0 0.0
  %412 = vmatprep.subr.mxu0 0.0
  %413 = vmatpush1.xpose.msra.mxu0 0.0
  %414 = vmatprep.subr.mxu0 0.0
  %415 = vmatpush1.xpose.msra.mxu0 0.0
  %416 = vmatprep.subr.mxu0 0.0
  %417 = vmatpush1.xpose.msra.mxu0 0.0
  %418 = vmatprep.subr.mxu0 0.0
  %419 = vmatpush1.xpose.msra.mxu0 0.0
  %420 = vmatprep.subr.mxu0 0.0
  %421 = vmatpush1.xpose.msra.mxu0 0.0
  %422 = vmatprep.subr.mxu0 0.0
  %423 = vmatpush1.xpose.msra.mxu0 0.0
  %424 = vmatprep.subr.mxu0 0.0
  %425 = vmatpush1.xpose.msra.mxu0 0.0
  %426 = vmatprep.subr.mxu0 0.0
  %427 = vmatpush1.xpose.msra.mxu0 %v199
  %428 = vmatprep.subr.mxu0 0.0
  %429 = vmatpush1.xpose.msra.mxu0 %v193
  %430 = vmatprep.subr.mxu0 0.0
  %431 = vmatpush1.xpose.msra.mxu0 %v187
  %432 = vmatprep.subr.mxu0 0.0
  %433 = vmatpush1.xpose.msra.mxu0 %v181
  %434 = vmatprep.subr.mxu0 0.0
  %435 = vmatpush1.xpose.msra.mxu0 %v175
  %436 = vmatprep.subr.mxu0 0.0
  %437 = vmatpush1.xpose.msra.mxu0 %v169
  %438 = vmatprep.subr.mxu0 0.0
  %439 = vmatpush1.xpose.msra.mxu0 %v163
  %440 = vmatprep.subr.mxu0 0.0
  %441 = vmatpush1.xpose.msra.mxu0 %v157
  %442 = vmatprep.subr.mxu0 0.0
  %443 = vmatpush2.xpose.msra.mxu0 0.0
  %444 = vmatprep.subr.mxu0 0.0
  %445 = vmatpush2.xpose.msra.mxu0 0.0
  %446 = vmatprep.subr.mxu0 0.0
  %447 = vmatpush2.xpose.msra.mxu0 0.0
  %448 = vmatprep.subr.mxu0 0.0
  %449 = vmatpush2.xpose.msra.mxu0 0.0
  %450 = vmatprep.subr.mxu0 0.0
  %451 = vmatpush2.xpose.msra.mxu0 0.0
  %452 = vmatprep.subr.mxu0 0.0
  %453 = vmatpush2.xpose.msra.mxu0 0.0
  %454 = vmatprep.subr.mxu0 0.0
  %455 = vmatpush2.xpose.msra.mxu0 0.0
  %456 = vmatprep.subr.mxu0 0.0
  %457 = vmatpush2.xpose.msra.mxu0 0.0
  %458 = vmatprep.subr.mxu0 0.0
  %459 = vmatpush2.xpose.msra.mxu0 0.0
  %460 = vmatprep.subr.mxu0 0.0
  %461 = vmatpush2.xpose.msra.mxu0 0.0
  %462 = vmatprep.subr.mxu0 0.0
  %463 = vmatpush2.xpose.msra.mxu0 0.0
  %464 = vmatprep.subr.mxu0 0.0
  %465 = vmatpush2.xpose.msra.mxu0 0.0
  %466 = vmatprep.subr.mxu0 0.0
  %467 = vmatpush2.xpose.msra.mxu0 0.0
  %468 = vmatprep.subr.mxu0 0.0
  %469 = vmatpush2.xpose.msra.mxu0 0.0
  %470 = vmatprep.subr.mxu0 0.0
  %471 = vmatpush2.xpose.msra.mxu0 0.0
  %472 = vmatprep.subr.mxu0 0.0
  %473 = vmatpush2.xpose.msra.mxu0 0.0
  %474 = vmatprep.mubr.f32.mxu0 0.0
  %475 = vmatmul.mubr.f32.gmra.mxu0 %v394
  %v476 = vpop.f32.mrf.mxu0
  %v477 = vadd.f32 0.0, %v476
  %v478 = vpop.f32.mrf.mxu0
  %479 = vmatprep.mubr.f32.mxu0 0.0
  %480 = vmatmul.mubr.f32.gmra.mxu0 %v395
  %v481 = vpop.f32.mrf.mxu0
  %v482 = vadd.f32 0.0, %v481
  %v483 = vpop.f32.mrf.mxu0
  %484 = vmatprep.mubr.f32.mxu0 0.0
  %485 = vmatmul.mubr.f32.gmra.mxu0 %v396
  %v486 = vpop.f32.mrf.mxu0
  %v487 = vadd.f32 0.0, %v486
  %v488 = vpop.f32.mrf.mxu0
  %489 = vmatprep.mubr.f32.mxu0 0.0
  %490 = vmatmul.mubr.f32.gmra.mxu0 %v397
  %v491 = vpop.f32.mrf.mxu0
  %v492 = vadd.f32 0.0, %v491
  %v493 = vpop.f32.mrf.mxu0
  %494 = vmatprep.mubr.f32.mxu0 0.0
  %495 = vmatmul.mubr.f32.gmra.mxu0 %v398
  %v496 = vpop.f32.mrf.mxu0
  %v497 = vadd.f32 0.0, %v496
  %v498 = vpop.f32.mrf.mxu0
  %499 = vmatprep.mubr.f32.mxu0 0.0
  %500 = vmatmul.mubr.f32.gmra.mxu0 %v399
  %v501 = vpop.f32.mrf.mxu0
  %v502 = vadd.f32 0.0, %v501
  %v503 = vpop.f32.mrf.mxu0
  %504 = vmatprep.mubr.f32.mxu0 0.0
  %505 = vmatmul.mubr.f32.gmra.mxu0 %v400
  %v506 = vpop.f32.mrf.mxu0
  %v507 = vadd.f32 0.0, %v506
  %v508 = vpop.f32.mrf.mxu0
  %509 = vmatprep.mubr.f32.mxu0 0.0
  %510 = vmatmul.mubr.f32.gmra.mxu0 %v401
  %v511 = vpop.f32.mrf.mxu0
  %v512 = vadd.f32 0.0, %v511
  %v513 = vpop.f32.mrf.mxu0
  %514 = vdwg.mxu0
  %515 = vmatprep.subr.mxu0 0.0
  %516 = vmatpush1.xpose.msra.mxu0 0.0
  %517 = vmatprep.subr.mxu0 0.0
  %518 = vmatpush1.xpose.msra.mxu0 0.0
  %519 = vmatprep.subr.mxu0 0.0
  %520 = vmatpush1.xpose.msra.mxu0 0.0
  %521 = vmatprep.subr.mxu0 0.0
  %522 = vmatpush1.xpose.msra.mxu0 0.0
  %523 = vmatprep.subr.mxu0 0.0
  %524 = vmatpush1.xpose.msra.mxu0 0.0
  %525 = vmatprep.subr.mxu0 0.0
  %526 = vmatpush1.xpose.msra.mxu0 0.0
  %527 = vmatprep.subr.mxu0 0.0
  %528 = vmatpush1.xpose.msra.mxu0 0.0
  %529 = vmatprep.subr.mxu0 0.0
  %530 = vmatpush1.xpose.msra.mxu0 0.0
  %531 = vmatprep.subr.mxu0 0.0
  %532 = vmatpush1.xpose.msra.mxu0 %v247
  %533 = vmatprep.subr.mxu0 0.0
  %534 = vmatpush1.xpose.msra.mxu0 %v241
  %535 = vmatprep.subr.mxu0 0.0
  %536 = vmatpush1.xpose.msra.mxu0 %v235
  %537 = vmatprep.subr.mxu0 0.0
  %538 = vmatpush1.xpose.msra.mxu0 %v229
  %539 = vmatprep.subr.mxu0 0.0
  %540 = vmatpush1.xpose.msra.mxu0 %v223
  %541 = vmatprep.subr.mxu0 0.0
  %542 = vmatpush1.xpose.msra.mxu0 %v217
  %543 = vmatprep.subr.mxu0 0.0
  %544 = vmatpush1.xpose.msra.mxu0 %v211
  %545 = vmatprep.subr.mxu0 0.0
  %546 = vmatpush1.xpose.msra.mxu0 %v205
  %547 = vmatprep.subr.mxu0 0.0
  %548 = vmatpush2.xpose.msra.mxu0 0.0
  %549 = vmatprep.subr.mxu0 0.0
  %550 = vmatpush2.xpose.msra.mxu0 0.0
  %551 = vmatprep.subr.mxu0 0.0
  %552 = vmatpush2.xpose.msra.mxu0 0.0
  %553 = vmatprep.subr.mxu0 0.0
  %554 = vmatpush2.xpose.msra.mxu0 0.0
  %555 = vmatprep.subr.mxu0 0.0
  %556 = vmatpush2.xpose.msra.mxu0 0.0
  %557 = vmatprep.subr.mxu0 0.0
  %558 = vmatpush2.xpose.msra.mxu0 0.0
  %559 = vmatprep.subr.mxu0 0.0
  %560 = vmatpush2.xpose.msra.mxu0 0.0
  %561 = vmatprep.subr.mxu0 0.0
  %562 = vmatpush2.xpose.msra.mxu0 0.0
  %563 = vmatprep.subr.mxu0 0.0
  %564 = vmatpush2.xpose.msra.mxu0 0.0
  %565 = vmatprep.subr.mxu0 0.0
  %566 = vmatpush2.xpose.msra.mxu0 0.0
  %567 = vmatprep.subr.mxu0 0.0
  %568 = vmatpush2.xpose.msra.mxu0 0.0
  %569 = vmatprep.subr.mxu0 0.0
  %570 = vmatpush2.xpose.msra.mxu0 0.0
  %571 = vmatprep.subr.mxu0 0.0
  %572 = vmatpush2.xpose.msra.mxu0 0.0
  %573 = vmatprep.subr.mxu0 0.0
  %574 = vmatpush2.xpose.msra.mxu0 0.0
  %575 = vmatprep.subr.mxu0 0.0
  %576 = vmatpush2.xpose.msra.mxu0 0.0
  %577 = vmatprep.subr.mxu0 0.0
  %578 = vmatpush2.xpose.msra.mxu0 0.0
  %579 = vmatprep.mubr.f32.mxu0 0.0
  %580 = vmatmul.mubr.f32.gmra.mxu0 %v402
  %v581 = vpop.f32.mrf.mxu0
  %v582 = vadd.f32 0.0, %v581
  %v583 = vpop.f32.mrf.mxu0
  %584 = vmatprep.mubr.f32.mxu0 0.0
  %585 = vmatmul.mubr.f32.gmra.mxu0 %v403
  %v586 = vpop.f32.mrf.mxu0
  %v587 = vadd.f32 0.0, %v586
  %v588 = vpop.f32.mrf.mxu0
  %589 = vmatprep.mubr.f32.mxu0 0.0
  %590 = vmatmul.mubr.f32.gmra.mxu0 %v404
  %v591 = vpop.f32.mrf.mxu0
  %v592 = vadd.f32 0.0, %v591
  %v593 = vpop.f32.mrf.mxu0
  %594 = vmatprep.mubr.f32.mxu0 0.0
  %595 = vmatmul.mubr.f32.gmra.mxu0 %v405
  %v596 = vpop.f32.mrf.mxu0
  %v597 = vadd.f32 0.0, %v596
  %v598 = vpop.f32.mrf.mxu0
  %599 = vmatprep.mubr.f32.mxu0 0.0
  %600 = vmatmul.mubr.f32.gmra.mxu0 %v406
  %v601 = vpop.f32.mrf.mxu0
  %v602 = vadd.f32 0.0, %v601
  %v603 = vpop.f32.mrf.mxu0
  %604 = vmatprep.mubr.f32.mxu0 0.0
  %605 = vmatmul.mubr.f32.gmra.mxu0 %v407
  %v606 = vpop.f32.mrf.mxu0
  %v607 = vadd.f32 0.0, %v606
  %v608 = vpop.f32.mrf.mxu0
  %609 = vmatprep.mubr.f32.mxu0 0.0
  %610 = vmatmul.mubr.f32.gmra.mxu0 %v408
  %v611 = vpop.f32.mrf.mxu0
  %v612 = vadd.f32 0.0, %v611
  %v613 = vpop.f32.mrf.mxu0
  %614 = vmatprep.mubr.f32.mxu0 0.0
  %615 = vmatmul.mubr.f32.gmra.mxu0 %v409
  %v616 = vpop.f32.mrf.mxu0
  %v617 = vadd.f32 0.0, %v616
  %v618 = vpop.f32.mrf.mxu0
  %619 = vdwg.mxu0
  %v620 = vlaneseq
  %v621 = vshrl.u32 %v620, 7
  %v622 = vadd.s32 %v621, 8
  %v623 = vadd.s32 %v621, 16
  %v624 = vadd.s32 %v621, 24
  %v625 = vadd.s32 %v621, 32
  %v626 = vadd.s32 %v621, 40
  %v627 = vadd.s32 %v621, 48
  %v628 = vadd.s32 %v621, 56
  %v629 = vlaneseq
  %v630 = vand.u32 %v629, 127
  %vm631 = vcmp.le.s32.totalorder %v630, %v621
  %vm632 = vcmp.le.s32.totalorder %v630, %v622
  %vm633 = vcmp.le.s32.totalorder %v630, %v623
  %vm634 = vcmp.le.s32.totalorder %v630, %v624
  %vm635 = vcmp.le.s32.totalorder %v630, %v625
  %vm636 = vcmp.le.s32.totalorder %v630, %v626
  %vm637 = vcmp.le.s32.totalorder %v630, %v627
  %vm638 = vcmp.le.s32.totalorder %v630, %v628
  %v639 = vsel %vm631, 1, 0
  %v640 = vsel %vm632, 1, 0
  %v641 = vsel %vm633, 1, 0
  %v642 = vsel %vm634, 1, 0
  %v643 = vsel %vm635, 1, 0
  %v644 = vsel %vm636, 1, 0
  %v645 = vsel %vm637, 1, 0
  %v646 = vsel %vm638, 1, 0
  %vm647 = vcmp.eq.s32.totalorder %v639, 1
  %vm648 = vcmp.eq.s32.totalorder %v640, 1
  %vm649 = vcmp.eq.s32.totalorder %v641, 1
  %vm650 = vcmp.eq.s32.totalorder %v642, 1
  %vm651 = vcmp.eq.s32.totalorder %v643, 1
  %vm652 = vcmp.eq.s32.totalorder %v644, 1
  %vm653 = vcmp.eq.s32.totalorder %v645, 1
  %vm654 = vcmp.eq.s32.totalorder %v646, 1
  %v655 = vsel %vm647, %v477, -inf
  %v656 = vsel %vm648, %v482, -inf
  %v657 = vsel %vm649, %v487, -inf
  %v658 = vsel %vm650, %v492, -inf
  %v659 = vsel %vm651, %v497, -inf
  %v660 = vsel %vm652, %v502, -inf
  %v661 = vsel %vm653, %v507, -inf
  %v662 = vsel %vm654, %v512, -inf
  %v663 = vsel %vm647, %v582, -inf
  %v664 = vsel %vm648, %v587, -inf
  %v665 = vsel %vm649, %v592, -inf
  %v666 = vsel %vm650, %v597, -inf
  %v667 = vsel %vm651, %v602, -inf
  %v668 = vsel %vm652, %v607, -inf
  %v669 = vsel %vm653, %v612, -inf
  %v670 = vsel %vm654, %v617, -inf
  %vm671 = vcmask 523264
  %v672 = vsel %vm671, %v655, -inf
  %673 = vmax.xlane.f32.xlu0 %v672
  %v674 = vpop.xlane.xlu0 %673
  %v675 = vsel %vm671, %v656, -inf
  %676 = vmax.xlane.f32.xlu0 %v675
  %v677 = vpop.xlane.xlu0 %676
  %v678 = vsel %vm671, %v657, -inf
  %679 = vmax.xlane.f32.xlu0 %v678
  %v680 = vpop.xlane.xlu0 %679
  %v681 = vsel %vm671, %v658, -inf
  %682 = vmax.xlane.f32.xlu0 %v681
  %v683 = vpop.xlane.xlu0 %682
  %v684 = vsel %vm671, %v659, -inf
  %685 = vmax.xlane.f32.xlu0 %v684
  %v686 = vpop.xlane.xlu0 %685
  %v687 = vsel %vm671, %v660, -inf
  %688 = vmax.xlane.f32.xlu0 %v687
  %v689 = vpop.xlane.xlu0 %688
  %v690 = vsel %vm671, %v661, -inf
  %691 = vmax.xlane.f32.xlu0 %v690
  %v692 = vpop.xlane.xlu0 %691
  %v693 = vsel %vm671, %v662, -inf
  %694 = vmax.xlane.f32.xlu0 %v693
  %v695 = vpop.xlane.xlu0 %694
  %v696 = vsel %vm671, %v663, -inf
  %697 = vmax.xlane.f32.xlu0 %v696
  %v698 = vpop.xlane.xlu0 %697
  %v699 = vsel %vm671, %v664, -inf
  %700 = vmax.xlane.f32.xlu0 %v699
  %v701 = vpop.xlane.xlu0 %700
  %v702 = vsel %vm671, %v665, -inf
  %703 = vmax.xlane.f32.xlu0 %v702
  %v704 = vpop.xlane.xlu0 %703
  %v705 = vsel %vm671, %v666, -inf
  %706 = vmax.xlane.f32.xlu0 %v705
  %v707 = vpop.xlane.xlu0 %706
  %v708 = vsel %vm671, %v667, -inf
  %709 = vmax.xlane.f32.xlu0 %v708
  %v710 = vpop.xlane.xlu0 %709
  %v711 = vsel %vm671, %v668, -inf
  %712 = vmax.xlane.f32.xlu0 %v711
  %v713 = vpop.xlane.xlu0 %712
  %v714 = vsel %vm671, %v669, -inf
  %715 = vmax.xlane.f32.xlu0 %v714
  %v716 = vpop.xlane.xlu0 %715
  %v717 = vsel %vm671, %v670, -inf
  %718 = vmax.xlane.f32.xlu0 %v717
  %v719 = vpop.xlane.xlu0 %718
  %v720 = vsub.f32 %v655, %v674
  %v721 = vsub.f32 %v656, %v677
  %v722 = vsub.f32 %v657, %v680
  %v723 = vsub.f32 %v658, %v683
  %v724 = vsub.f32 %v659, %v686
  %v725 = vsub.f32 %v660, %v689
  %v726 = vsub.f32 %v661, %v692
  %v727 = vsub.f32 %v662, %v695
  %v728 = vsub.f32 %v663, %v698
  %v729 = vsub.f32 %v664, %v701
  %v730 = vsub.f32 %v665, %v704
  %v731 = vsub.f32 %v666, %v707
  %v732 = vsub.f32 %v667, %v710
  %v733 = vsub.f32 %v668, %v713
  %v734 = vsub.f32 %v669, %v716
  %v735 = vsub.f32 %v670, %v719
  %v736 = vmul.f32 %v720, 1.442695
  %v737 = vpow.pop %v736
  %v738 = vmul.f32 %v721, 1.442695
  %v739 = vpow.pop %v738
  %v740 = vmul.f32 %v722, 1.442695
  %v741 = vpow.pop %v740
  %v742 = vmul.f32 %v723, 1.442695
  %v743 = vpow.pop %v742
  %v744 = vmul.f32 %v724, 1.442695
  %v745 = vpow.pop %v744
  %v746 = vmul.f32 %v725, 1.442695
  %v747 = vpow.pop %v746
  %v748 = vmul.f32 %v726, 1.442695
  %v749 = vpow.pop %v748
  %v750 = vmul.f32 %v727, 1.442695
  %v751 = vpow.pop %v750
  %v752 = vmul.f32 %v728, 1.442695
  %v753 = vpow.pop %v752
  %v754 = vmul.f32 %v729, 1.442695
  %v755 = vpow.pop %v754
  %v756 = vmul.f32 %v730, 1.442695
  %v757 = vpow.pop %v756
  %v758 = vmul.f32 %v731, 1.442695
  %v759 = vpow.pop %v758
  %v760 = vmul.f32 %v732, 1.442695
  %v761 = vpow.pop %v760
  %v762 = vmul.f32 %v733, 1.442695
  %v763 = vpow.pop %v762
  %v764 = vmul.f32 %v734, 1.442695
  %v765 = vpow.pop %v764
  %v766 = vmul.f32 %v735, 1.442695
  %v767 = vpow.pop %v766
  %v768 = vsel %vm671, %v737, 0.0
  %769 = vadd.xlane.f32.xlu0 %v768
  %v770 = vpop.xlane.xlu0 %769
  %v771 = vsel %vm671, %v739, 0.0
  %772 = vadd.xlane.f32.xlu0 %v771
  %v773 = vpop.xlane.xlu0 %772
  %v774 = vsel %vm671, %v741, 0.0
  %775 = vadd.xlane.f32.xlu0 %v774
  %v776 = vpop.xlane.xlu0 %775
  %v777 = vsel %vm671, %v743, 0.0
  %778 = vadd.xlane.f32.xlu0 %v777
  %v779 = vpop.xlane.xlu0 %778
  %v780 = vsel %vm671, %v745, 0.0
  %781 = vadd.xlane.f32.xlu0 %v780
  %v782 = vpop.xlane.xlu0 %781
  %v783 = vsel %vm671, %v747, 0.0
  %784 = vadd.xlane.f32.xlu0 %v783
  %v785 = vpop.xlane.xlu0 %784
  %v786 = vsel %vm671, %v749, 0.0
  %787 = vadd.xlane.f32.xlu0 %v786
  %v788 = vpop.xlane.xlu0 %787
  %v789 = vsel %vm671, %v751, 0.0
  %790 = vadd.xlane.f32.xlu0 %v789
  %v791 = vpop.xlane.xlu0 %790
  %v792 = vsel %vm671, %v753, 0.0
  %793 = vadd.xlane.f32.xlu0 %v792
  %v794 = vpop.xlane.xlu0 %793
  %v795 = vsel %vm671, %v755, 0.0
  %796 = vadd.xlane.f32.xlu0 %v795
  %v797 = vpop.xlane.xlu0 %796
  %v798 = vsel %vm671, %v757, 0.0
  %799 = vadd.xlane.f32.xlu0 %v798
  %v800 = vpop.xlane.xlu0 %799
  %v801 = vsel %vm671, %v759, 0.0
  %802 = vadd.xlane.f32.xlu0 %v801
  %v803 = vpop.xlane.xlu0 %802
  %v804 = vsel %vm671, %v761, 0.0
  %805 = vadd.xlane.f32.xlu0 %v804
  %v806 = vpop.xlane.xlu0 %805
  %v807 = vsel %vm671, %v763, 0.0
  %808 = vadd.xlane.f32.xlu0 %v807
  %v809 = vpop.xlane.xlu0 %808
  %v810 = vsel %vm671, %v765, 0.0
  %811 = vadd.xlane.f32.xlu0 %v810
  %v812 = vpop.xlane.xlu0 %811
  %v813 = vsel %vm671, %v767, 0.0
  %814 = vadd.xlane.f32.xlu0 %v813
  %v815 = vpop.xlane.xlu0 %814
  %v816 = vrcp.pop %v770
  %v817 = vrcp.pop %v773
  %v818 = vrcp.pop %v776
  %v819 = vrcp.pop %v779
  %v820 = vrcp.pop %v782
  %v821 = vrcp.pop %v785
  %v822 = vrcp.pop %v788
  %v823 = vrcp.pop %v791
  %v824 = vrcp.pop %v794
  %v825 = vrcp.pop %v797
  %v826 = vrcp.pop %v800
  %v827 = vrcp.pop %v803
  %v828 = vrcp.pop %v806
  %v829 = vrcp.pop %v809
  %v830 = vrcp.pop %v812
  %v831 = vrcp.pop %v815
  %v832 = vmul.f32 %v737, %v816
  %v833 = vmul.f32 %v739, %v817
  %v834 = vmul.f32 %v741, %v818
  %v835 = vmul.f32 %v743, %v819
  %v836 = vmul.f32 %v745, %v820
  %v837 = vmul.f32 %v747, %v821
  %v838 = vmul.f32 %v749, %v822
  %v839 = vmul.f32 %v751, %v823
  %v840 = vmul.f32 %v753, %v824
  %v841 = vmul.f32 %v755, %v825
  %v842 = vmul.f32 %v757, %v826
  %v843 = vmul.f32 %v759, %v827
  %v844 = vmul.f32 %v761, %v828
  %v845 = vmul.f32 %v763, %v829
  %v846 = vmul.f32 %v765, %v830
  %v847 = vmul.f32 %v767, %v831
  %v849 = vsel %vm671, %v832, 0
  %v852 = vsel %vm671, %v833, 0
  %v855 = vsel %vm671, %v834, 0
  %v858 = vsel %vm671, %v835, 0
  %v861 = vsel %vm671, %v836, 0
  %v864 = vsel %vm671, %v837, 0
  %v867 = vsel %vm671, %v838, 0
  %v870 = vsel %vm671, %v839, 0
  %872 = vmatprep.subr.mxu0 0.0
  %873 = vmatpush1.msra.mxu0 0.0
  %874 = vmatprep.subr.mxu0 0.0
  %875 = vmatpush1.msra.mxu0 0.0
  %876 = vmatprep.subr.mxu0 0.0
  %877 = vmatpush1.msra.mxu0 0.0
  %878 = vmatprep.subr.mxu0 0.0
  %879 = vmatpush1.msra.mxu0 0.0
  %880 = vmatprep.subr.mxu0 0.0
  %881 = vmatpush1.msra.mxu0 0.0
  %882 = vmatprep.subr.mxu0 0.0
  %883 = vmatpush1.msra.mxu0 0.0
  %884 = vmatprep.subr.mxu0 0.0
  %885 = vmatpush1.msra.mxu0 0.0
  %886 = vmatprep.subr.mxu0 0.0
  %887 = vmatpush1.msra.mxu0 0.0
  %888 = vmatprep.subr.mxu0 0.0
  %889 = vmatpush1.msra.mxu0 %v351
  %890 = vmatprep.subr.mxu0 0.0
  %891 = vmatpush1.msra.mxu0 %v346
  %892 = vmatprep.subr.mxu0 0.0
  %893 = vmatpush1.msra.mxu0 %v341
  %894 = vmatprep.subr.mxu0 0.0
  %895 = vmatpush1.msra.mxu0 %v336
  %896 = vmatprep.subr.mxu0 0.0
  %897 = vmatpush1.msra.mxu0 %v331
  %898 = vmatprep.subr.mxu0 0.0
  %899 = vmatpush1.msra.mxu0 %v326
  %900 = vmatprep.subr.mxu0 0.0
  %901 = vmatpush1.msra.mxu0 %v321
  %902 = vmatprep.subr.mxu0 0.0
  %903 = vmatpush1.msra.mxu0 %v316
  %904 = vmatprep.subr.mxu0 0.0
  %905 = vmatpush2.msra.mxu0 0.0
  %906 = vmatprep.subr.mxu0 0.0
  %907 = vmatpush2.msra.mxu0 0.0
  %908 = vmatprep.subr.mxu0 0.0
  %909 = vmatpush2.msra.mxu0 0.0
  %910 = vmatprep.subr.mxu0 0.0
  %911 = vmatpush2.msra.mxu0 0.0
  %912 = vmatprep.subr.mxu0 0.0
  %913 = vmatpush2.msra.mxu0 0.0
  %914 = vmatprep.subr.mxu0 0.0
  %915 = vmatpush2.msra.mxu0 0.0
  %916 = vmatprep.subr.mxu0 0.0
  %917 = vmatpush2.msra.mxu0 0.0
  %918 = vmatprep.subr.mxu0 0.0
  %919 = vmatpush2.msra.mxu0 0.0
  %920 = vmatprep.subr.mxu0 0.0
  %921 = vmatpush2.msra.mxu0 0.0
  %922 = vmatprep.subr.mxu0 0.0
  %923 = vmatpush2.msra.mxu0 0.0
  %924 = vmatprep.subr.mxu0 0.0
  %925 = vmatpush2.msra.mxu0 0.0
  %926 = vmatprep.subr.mxu0 0.0
  %927 = vmatpush2.msra.mxu0 0.0
  %928 = vmatprep.subr.mxu0 0.0
  %929 = vmatpush2.msra.mxu0 0.0
  %930 = vmatprep.subr.mxu0 0.0
  %931 = vmatpush2.msra.mxu0 0.0
  %932 = vmatprep.subr.mxu0 0.0
  %933 = vmatpush2.msra.mxu0 0.0
  %934 = vmatprep.subr.mxu0 0.0
  %935 = vmatpush2.msra.mxu0 0.0
  %936 = vmatprep.mubr.f32.mxu0 0.0
  %937 = vmatmul.mubr.f32.gmra.mxu0 %v849
  %v938 = vpop.f32.mrf.mxu0
  %v939 = vadd.f32 0.0, %v938
  %v940 = vpop.f32.mrf.mxu0
  %941 = vmatprep.mubr.f32.mxu0 0.0
  %942 = vmatmul.mubr.f32.gmra.mxu0 %v852
  %v943 = vpop.f32.mrf.mxu0
  %v944 = vadd.f32 0.0, %v943
  %v945 = vpop.f32.mrf.mxu0
  %946 = vmatprep.mubr.f32.mxu0 0.0
  %947 = vmatmul.mubr.f32.gmra.mxu0 %v855
  %v948 = vpop.f32.mrf.mxu0
  %v949 = vadd.f32 0.0, %v948
  %v950 = vpop.f32.mrf.mxu0
  %951 = vmatprep.mubr.f32.mxu0 0.0
  %952 = vmatmul.mubr.f32.gmra.mxu0 %v858
  %v953 = vpop.f32.mrf.mxu0
  %v954 = vadd.f32 0.0, %v953
  %v955 = vpop.f32.mrf.mxu0
  %956 = vmatprep.mubr.f32.mxu0 0.0
  %957 = vmatmul.mubr.f32.gmra.mxu0 %v861
  %v958 = vpop.f32.mrf.mxu0
  %v959 = vadd.f32 0.0, %v958
  %v960 = vpop.f32.mrf.mxu0
  %961 = vmatprep.mubr.f32.mxu0 0.0
  %962 = vmatmul.mubr.f32.gmra.mxu0 %v864
  %v963 = vpop.f32.mrf.mxu0
  %v964 = vadd.f32 0.0, %v963
  %v965 = vpop.f32.mrf.mxu0
  %966 = vmatprep.mubr.f32.mxu0 0.0
  %967 = vmatmul.mubr.f32.gmra.mxu0 %v867
  %v968 = vpop.f32.mrf.mxu0
  %v969 = vadd.f32 0.0, %v968
  %v970 = vpop.f32.mrf.mxu0
  %971 = vmatprep.mubr.f32.mxu0 0.0
  %972 = vmatmul.mubr.f32.gmra.mxu0 %v870
  %v973 = vpop.f32.mrf.mxu0
  %v974 = vadd.f32 0.0, %v973
  %v975 = vpop.f32.mrf.mxu0
  %976 = vdwg.mxu0
  %v978 = vsel %vm671, %v840, 0
  %v981 = vsel %vm671, %v841, 0
  %v984 = vsel %vm671, %v842, 0
  %v987 = vsel %vm671, %v843, 0
  %v990 = vsel %vm671, %v844, 0
  %v993 = vsel %vm671, %v845, 0
  %v996 = vsel %vm671, %v846, 0
  %v999 = vsel %vm671, %v847, 0
  %1001 = vmatprep.subr.mxu0 0.0
  %1002 = vmatpush1.msra.mxu0 0.0
  %1003 = vmatprep.subr.mxu0 0.0
  %1004 = vmatpush1.msra.mxu0 0.0
  %1005 = vmatprep.subr.mxu0 0.0
  %1006 = vmatpush1.msra.mxu0 0.0
  %1007 = vmatprep.subr.mxu0 0.0
  %1008 = vmatpush1.msra.mxu0 0.0
  %1009 = vmatprep.subr.mxu0 0.0
  %1010 = vmatpush1.msra.mxu0 0.0
  %1011 = vmatprep.subr.mxu0 0.0
  %1012 = vmatpush1.msra.mxu0 0.0
  %1013 = vmatprep.subr.mxu0 0.0
  %1014 = vmatpush1.msra.mxu0 0.0
  %1015 = vmatprep.subr.mxu0 0.0
  %1016 = vmatpush1.msra.mxu0 0.0
  %1017 = vmatprep.subr.mxu0 0.0
  %1018 = vmatpush1.msra.mxu0 %v391
  %1019 = vmatprep.subr.mxu0 0.0
  %1020 = vmatpush1.msra.mxu0 %v386
  %1021 = vmatprep.subr.mxu0 0.0
  %1022 = vmatpush1.msra.mxu0 %v381
  %1023 = vmatprep.subr.mxu0 0.0
  %1024 = vmatpush1.msra.mxu0 %v376
  %1025 = vmatprep.subr.mxu0 0.0
  %1026 = vmatpush1.msra.mxu0 %v371
  %1027 = vmatprep.subr.mxu0 0.0
  %1028 = vmatpush1.msra.mxu0 %v366
  %1029 = vmatprep.subr.mxu0 0.0
  %1030 = vmatpush1.msra.mxu0 %v361
  %1031 = vmatprep.subr.mxu0 0.0
  %1032 = vmatpush1.msra.mxu0 %v356
  %1033 = vmatprep.subr.mxu0 0.0
  %1034 = vmatpush2.msra.mxu0 0.0
  %1035 = vmatprep.subr.mxu0 0.0
  %1036 = vmatpush2.msra.mxu0 0.0
  %1037 = vmatprep.subr.mxu0 0.0
  %1038 = vmatpush2.msra.mxu0 0.0
  %1039 = vmatprep.subr.mxu0 0.0
  %1040 = vmatpush2.msra.mxu0 0.0
  %1041 = vmatprep.subr.mxu0 0.0
  %1042 = vmatpush2.msra.mxu0 0.0
  %1043 = vmatprep.subr.mxu0 0.0
  %1044 = vmatpush2.msra.mxu0 0.0
  %1045 = vmatprep.subr.mxu0 0.0
  %1046 = vmatpush2.msra.mxu0 0.0
  %1047 = vmatprep.subr.mxu0 0.0
  %1048 = vmatpush2.msra.mxu0 0.0
  %1049 = vmatprep.subr.mxu0 0.0
  %1050 = vmatpush2.msra.mxu0 0.0
  %1051 = vmatprep.subr.mxu0 0.0
  %1052 = vmatpush2.msra.mxu0 0.0
  %1053 = vmatprep.subr.mxu0 0.0
  %1054 = vmatpush2.msra.mxu0 0.0
  %1055 = vmatprep.subr.mxu0 0.0
  %1056 = vmatpush2.msra.mxu0 0.0
  %1057 = vmatprep.subr.mxu0 0.0
  %1058 = vmatpush2.msra.mxu0 0.0
  %1059 = vmatprep.subr.mxu0 0.0
  %1060 = vmatpush2.msra.mxu0 0.0
  %1061 = vmatprep.subr.mxu0 0.0
  %1062 = vmatpush2.msra.mxu0 0.0
  %1063 = vmatprep.subr.mxu0 0.0
  %1064 = vmatpush2.msra.mxu0 0.0
  %1065 = vmatprep.mubr.f32.mxu0 0.0
  %1066 = vmatmul.mubr.f32.gmra.mxu0 %v978
  %v1067 = vpop.f32.mrf.mxu0
  %v1068 = vadd.f32 0.0, %v1067
  %v1069 = vpop.f32.mrf.mxu0
  %1070 = vmatprep.mubr.f32.mxu0 0.0
  %1071 = vmatmul.mubr.f32.gmra.mxu0 %v981
  %v1072 = vpop.f32.mrf.mxu0
  %v1073 = vadd.f32 0.0, %v1072
  %v1074 = vpop.f32.mrf.mxu0
  %1075 = vmatprep.mubr.f32.mxu0 0.0
  %1076 = vmatmul.mubr.f32.gmra.mxu0 %v984
  %v1077 = vpop.f32.mrf.mxu0
  %v1078 = vadd.f32 0.0, %v1077
  %v1079 = vpop.f32.mrf.mxu0
  %1080 = vmatprep.mubr.f32.mxu0 0.0
  %1081 = vmatmul.mubr.f32.gmra.mxu0 %v987
  %v1082 = vpop.f32.mrf.mxu0
  %v1083 = vadd.f32 0.0, %v1082
  %v1084 = vpop.f32.mrf.mxu0
  %1085 = vmatprep.mubr.f32.mxu0 0.0
  %1086 = vmatmul.mubr.f32.gmra.mxu0 %v990
  %v1087 = vpop.f32.mrf.mxu0
  %v1088 = vadd.f32 0.0, %v1087
  %v1089 = vpop.f32.mrf.mxu0
  %1090 = vmatprep.mubr.f32.mxu0 0.0
  %1091 = vmatmul.mubr.f32.gmra.mxu0 %v993
  %v1092 = vpop.f32.mrf.mxu0
  %v1093 = vadd.f32 0.0, %v1092
  %v1094 = vpop.f32.mrf.mxu0
  %1095 = vmatprep.mubr.f32.mxu0 0.0
  %1096 = vmatmul.mubr.f32.gmra.mxu0 %v996
  %v1097 = vpop.f32.mrf.mxu0
  %v1098 = vadd.f32 0.0, %v1097
  %v1099 = vpop.f32.mrf.mxu0
  %1100 = vmatprep.mubr.f32.mxu0 0.0
  %1101 = vmatmul.mubr.f32.gmra.mxu0 %v999
  %v1102 = vpop.f32.mrf.mxu0
  %v1103 = vadd.f32 0.0, %v1102
  %v1104 = vpop.f32.mrf.mxu0
  %1105 = vdwg.mxu0
  %vm1106 = vcmask 130048
  %1107 = vst.msk [vmem:[%s2] sm:$0xff] %vm1106, %v939
  %1108 = vst.msk [vmem:[%s2 + $0x8] sm:$0xff] %vm1106, %v944
  %1109 = vst.msk [vmem:[%s2 + $0x10] sm:$0xff] %vm1106, %v949
  %1110 = vst.msk [vmem:[%s2 + $0x18] sm:$0xff] %vm1106, %v954
  %1111 = vst.msk [vmem:[%s2 + $0x20] sm:$0xff] %vm1106, %v959
  %1112 = vst.msk [vmem:[%s2 + $0x28] sm:$0xff] %vm1106, %v964
  %1113 = vst.msk [vmem:[%s2 + $0x30] sm:$0xff] %vm1106, %v969
  %1114 = vst.msk [vmem:[%s2 + $0x38] sm:$0xff] %vm1106, %v974
  %1115 = vst.msk [vmem:[%s2 + $0x40] sm:$0xff] %vm1106, %v1068
  %1116 = vst.msk [vmem:[%s2 + $0x48] sm:$0xff] %vm1106, %v1073
  %1117 = vst.msk [vmem:[%s2 + $0x50] sm:$0xff] %vm1106, %v1078
  %1118 = vst.msk [vmem:[%s2 + $0x58] sm:$0xff] %vm1106, %v1083
  %1119 = vst.msk [vmem:[%s2 + $0x60] sm:$0xff] %vm1106, %v1088
  %1120 = vst.msk [vmem:[%s2 + $0x68] sm:$0xff] %vm1106, %v1093
  %1121 = vst.msk [vmem:[%s2 + $0x70] sm:$0xff] %vm1106, %v1098
  %1122 = vst.msk [vmem:[%s2 + $0x78] sm:$0xff] %vm1106, %v1103
  // Predicated region
  $region10: #{head_forward.1} parent=0 // pred_check
    _
  $region11: #{head_forward.1} parent=0 // pred_check_branch
    %1124 = sbr.rel (0) target = $region13
  $region12: #{head_forward.1} parent=0 // pred_region
    _
  $region13: #{head_forward.1} parent=0 // pred_fallthru
    _
  // Predicated region
  $region14: #{head_forward.1} parent=0 // pred_check
    _
  $region15: #{head_forward.1} parent=0 // pred_check_branch
    %1126 = sbr.rel (0) target = $region17
  $region16: #{head_forward.1} parent=0 // pred_region
    _
  $region17: #{head_forward.1} parent=0 // pred_fallthru
    _

</llo_original>
